<compile_context>
chip_gen: v5e
topology: v5e:2x2
jax: 0.10.0
libtpu: 0.0.40
codegen_flags: <defaults>
</compile_context>

<pallas_src>
import functools

import jax
import jax.numpy as jnp
from jax.experimental import pallas as pl
from jax.experimental.pallas import tpu as pltpu


# ----------------------------------------------------------------------------
# Small helpers (all trace-time Python on static shapes)
# ----------------------------------------------------------------------------
def _cdiv(a: int, b: int) -> int:
    return -(-a // b)


def _round_up(a: int, m: int) -> int:
    return _cdiv(a, m) * m


def _sublane_count(dtype) -> int:
    """Packed rows per sublane group: 8 for f32, 16 for bf16, 32 for int8/fp8."""
    bits = jnp.dtype(dtype).itemsize * 8
    return max(8, 256 // bits)


def _default_vmem_limit() -> int:
    """Generation-aware VMEM request with headroom (never all of physical)."""
    phys = 64 * 1024 * 1024  # conservative fallback (v7x physical per TC)
    try:
        info = pltpu.get_tpu_info()
        phys = int(getattr(info, "vmem_capacity_bytes", phys) or phys)
    except Exception:
        pass
    return (phys * 3) // 4  # 96 MiB on v5e/v6e, 48 MiB on v7x


def _balanced_tile(dim: int, cap: int, align: int) -> int:
    """Largest tile <= cap, balanced so padding waste is bounded by one align group."""
    cap = max(align, (cap // align) * align)
    if dim <= cap:
        return dim  # single full-extent block (always a legal block shape)
    nblocks = _cdiv(dim, cap)
    return _round_up(_cdiv(dim, nblocks), align)


# ----------------------------------------------------------------------------
# Kernels
# ----------------------------------------------------------------------------
def _fwd_kernel_single_k(x_ref, w_ref, o_ref):
    """2-D grid: whole K in one block -> no reduction axis, no scratch."""
    o_ref[...] = jnp.dot(
        x_ref[...], w_ref[...], preferred_element_type=jnp.float32
    ).astype(o_ref.dtype)


def _fwd_kernel_acc_inplace(x_ref, w_ref, o_ref):
    """3-D grid, f32 output: accumulate directly into the resident out block."""
    p = jnp.dot(x_ref[...], w_ref[...], preferred_element_type=jnp.float32)
    k = pl.program_id(2)

    @pl.when(k == 0)
    def _():
        o_ref[...] = p  # store first partial product directly (no zero-fill)

    @pl.when(k > 0)
    def _():
        o_ref[...] += p


def _fwd_kernel_acc_scratch(x_ref, w_ref, o_ref, acc_ref):
    """3-D grid, narrow output dtype: f32 VMEM accumulator, cast at the end."""
    p = jnp.dot(x_ref[...], w_ref[...], preferred_element_type=jnp.float32)
    k = pl.program_id(2)

    @pl.when(k == 0)
    def _():
        acc_ref[...] = p

    @pl.when(k > 0)
    def _():
        acc_ref[...] += p

    @pl.when(k == pl.num_programs(2) - 1)
    def _():
        o_ref[...] = acc_ref[...].astype(o_ref.dtype)


# ----------------------------------------------------------------------------
# Wrapper
# ----------------------------------------------------------------------------
@functools.partial(
    jax.jit, static_argnames=("tm", "tn", "tk", "operand_dtype", "vmem_limit_bytes")
)
def connection_forward(
    x,
    w,
    *,
    tm: int | None = None,
    tn: int | None = None,
    tk: int | None = None,
    operand_dtype=None,
    vmem_limit_bytes: int | None = None,
):
    """Pre-activations of downstream neurons: x @ w (tiled Pallas TPU kernel).

    x: [batch, input_size]   w: [input_size, output_size]
    returns [batch, output_size] in x's original dtype.
    """
    squeeze = x.ndim == 1
    if squeeze:
        x = x[None, :]
    B, K = x.shape
    K2, N = w.shape
    assert K == K2, "input_size mismatch between input and weights"

    out_dtype = x.dtype

    # bf16 operands by default (MXU-native on all generations); f32 accumulation.
    if operand_dtype is None:
        op_dtype = jnp.bfloat16 if jnp.dtype(x.dtype) == jnp.dtype(jnp.float32) else x.dtype
    else:
        op_dtype = operand_dtype
    if x.dtype != jnp.dtype(op_dtype):
        x = x.astype(op_dtype)
    if w.dtype != jnp.dtype(op_dtype):
        w = w.astype(op_dtype)
    # TODO(synk): for repeated inference with a fixed Connection, cast (and, if
    # needed, K-pad) w once outside this call and pass the converted weight in.

    ob = jnp.dtype(op_dtype).itemsize
    sb = jnp.dtype(out_dtype).itemsize
    sub = _sublane_count(op_dtype)

    limit = _default_vmem_limit() if vmem_limit_bytes is None else vmem_limit_bytes
    budget = int(limit * 0.9)

    auto_tiles = tm is None and tn is None
    if tm is None:
        tm = _balanced_tile(B, 512, sub if B >= sub else 8)
    if tn is None:
        tn = _balanced_tile(N, 1024, 128)

    # v7x megacore: keep >= 2 output tiles on the 'parallel' axes when possible.
    if auto_tiles and _cdiv(B, tm) * _cdiv(N, tn) == 1:
        if N >= 256:
            tn = _round_up(_cdiv(N, 2), 128)
        elif B >= 16:
            tm = _round_up(_cdiv(B, 2), 8)

    gm, gn = _cdiv(B, tm), _cdiv(N, tn)

    # Double-buffered footprint if the whole K reduction fits one block.
    single_fp = 2 * ob * (tm * K + K * tn) + 2 * sb * tm * tn
    use_single = (tk is None and single_fp <= budget) or (tk is not None and tk >= K)

    compiler_2d = pltpu.CompilerParams(
        dimension_semantics=("parallel", "parallel"),
        vmem_limit_bytes=limit,
    )

    if use_single:
        # Choose which operand stays resident across the fast (inner) grid axis:
        # layout A keeps x resident (w re-streamed gm times), layout B keeps w
        # resident (x re-streamed gn times). Pick the cheaper re-stream.
        restream_w = (gm - 1) * K * N
        restream_x = (gn - 1) * K * B
        if restream_x < restream_w:
            grid = (gn, gm)
            x_map = lambda j, i: (i, 0)
            w_map = lambda j, i: (0, j)
            o_map = lambda j, i: (i, j)
        else:
            grid = (gm, gn)
            x_map = lambda i, j: (i, 0)
            w_map = lambda i, j: (0, j)
            o_map = lambda i, j: (i, j)

        out = pl.pallas_call(
            _fwd_kernel_single_k,
            out_shape=jax.ShapeDtypeStruct((B, N), out_dtype),
            grid_spec=pltpu.PrefetchScalarGridSpec(
                num_scalar_prefetch=0,
                grid=grid,
                in_specs=[
                    pl.BlockSpec((tm, K), x_map),
                    pl.BlockSpec((K, tn), w_map),
                ],
                out_specs=pl.BlockSpec((tm, tn), o_map),
            ),
            compiler_params=compiler_2d,
        )(x, w)
        return out[0] if squeeze else out

    # ------------------------- 3-D reduction path ---------------------------
    needs_scratch = jnp.dtype(out_dtype) != jnp.dtype(jnp.float32)

    if tk is None:
        # Largest 128-aligned tk fitting the VMEM budget; shrink tn/tm only if
        # even tk=128 would not fit.
        while True:
            fixed = 2 * sb * tm * tn + (4 * tm * tn if needs_scratch else 0)
            per_k = 2 * ob * (tm + tn)
            tk_fit = (budget - fixed) // per_k if budget > fixed else 0
            if tk_fit >= 128 or (tn <= 128 and tm <= 8):
                break
            if tn > 128:
                tn = max(128, ((tn // 2) // 128) * 128)
            else:
                tm = max(8, ((tm // 2) // 8) * 8)
        tk = max(128, min((tk_fit // 128) * 128, _round_up(K, 128)))
    tk = _round_up(tk, 128)

    gm, gn = _cdiv(B, tm), _cdiv(N, tn)

    # Only the reduction dim needs zero padding (required for correctness when
    # K does not divide tk); ragged M/N edge blocks are handled by the grid.
    Kp = _round_up(K, tk)
    if Kp != K:
        x = jnp.pad(x, ((0, 0), (0, Kp - K)))
        w = jnp.pad(w, ((0, Kp - K), (0, 0)))
    gk = Kp // tk

    if needs_scratch:
        kernel = _fwd_kernel_acc_scratch
        scratch = (pltpu.VMEM((tm, tn), jnp.float32),)
    else:
        kernel = _fwd_kernel_acc_inplace
        scratch = ()

    out = pl.pallas_call(
        kernel,
        out_shape=jax.ShapeDtypeStruct((B, N), out_dtype),
        grid_spec=pltpu.PrefetchScalarGridSpec(
            num_scalar_prefetch=0,
            grid=(gm, gn, gk),
            in_specs=[
                pl.BlockSpec((tm, tk), lambda i, j, k: (i, k)),
                pl.BlockSpec((tk, tn), lambda i, j, k: (k, j)),
            ],
            out_specs=pl.BlockSpec((tm, tn), lambda i, j, k: (i, j)),
            scratch_shapes=scratch,
        ),
        compiler_params=pltpu.CompilerParams(
            dimension_semantics=("parallel", "parallel", "arbitrary"),
            vmem_limit_bytes=limit,
        ),
    )(x, w)
    return out[0] if squeeze else out


# TODO(synk): `update` / `partial_forward` / `reset_state_variables` are abstract
# learning-rule hooks with no defined computation in the spec; only the forward
# pre-activation matmul is implemented. Weight-histogram plotting is host-side
# matplotlib and has no kernel equivalent.


if __name__ == "__main__":
    key = jax.random.PRNGKey(0)
    k_x, k_w, k_x2, k_w2, k_x3, k_w3 = jax.random.split(key, 6)

    # --- 1) small shapes, default bf16-operand fast path (single-K kernel) ---
    batch, input_size, output_size = 8, 32, 128
    x = (jax.random.uniform(k_x, (batch, input_size)) < 0.5).astype(jnp.float32)
    w = jax.random.normal(k_w, (input_size, output_size), dtype=jnp.float32)

    ref = jnp.dot(x, w, precision=jax.lax.Precision.HIGHEST)

    out = jax.block_until_ready(connection_forward(x, w))
    assert out.shape == (batch, output_size)
    assert out.dtype == jnp.float32
    assert jnp.allclose(out, ref, atol=2e-1, rtol=5e-2), "bf16 fast path mismatch"

    # f32 escape hatch should be (near-)exact.
    out_f32 = jax.block_until_ready(connection_forward(x, w, operand_dtype=jnp.float32))
    assert jnp.allclose(out_f32, ref, atol=1e-3, rtol=1e-3), "f32 path mismatch"

    # --- 2) uneven shapes + forced K reduction (3-D in-place accumulate path) ---
    b2, k2, n2 = 20, 300, 200
    x2 = (jax.random.uniform(k_x2, (b2, k2)) < 0.5).astype(jnp.float32)
    w2 = jax.random.normal(k_w2, (k2, n2), dtype=jnp.float32)
    ref2 = jnp.dot(x2, w2, precision=jax.lax.Precision.HIGHEST)
    out2 = jax.block_until_ready(
        connection_forward(x2, w2, tk=128, operand_dtype=jnp.float32)
    )
    assert out2.shape == (b2, n2)
    assert jnp.allclose(out2, ref2, atol=1e-3, rtol=1e-3), "3-D in-place path mismatch"

    # --- 3) bf16 inputs/outputs + forced K reduction (scratch-accumulator path) ---
    b3, k3, n3 = 16, 256, 256
    x3 = (jax.random.uniform(k_x3, (b3, k3)) < 0.5).astype(jnp.bfloat16)
    w3 = jax.random.normal(k_w3, (k3, n3), dtype=jnp.float32).astype(jnp.bfloat16)
    ref3 = jnp.dot(x3.astype(jnp.float32), w3.astype(jnp.float32),
                   precision=jax.lax.Precision.HIGHEST)
    out3 = jax.block_until_ready(connection_forward(x3, w3, tk=128))
    assert out3.shape == (b3, n3)
    assert out3.dtype == jnp.bfloat16
    assert jnp.allclose(out3.astype(jnp.float32), ref3, atol=5e-1, rtol=5e-2), \
        "3-D scratch path mismatch"

    print("KERNEL_OK")
</pallas_src>

<mosaic_0001>
module attributes {stable_mosaic.version = 11 : i64} {
  func.func @_fwd_kernel_single_k(%arg0: i32, %arg1: i32, %arg2: memref<8x32xbf16, #tpu.memory_space<vmem>>, %arg3: memref<32x128xbf16, #tpu.memory_space<vmem>>, %arg4: memref<8x128xf32, #tpu.memory_space<vmem>>) attributes {dimension_semantics = [#tpu.dimension_semantics<parallel>, #tpu.dimension_semantics<parallel>], iteration_bounds = array<i64: 1, 1>, scalar_prefetch = 0 : i64, scratch_operands = 0 : i64, tpu.core_type = #tpu.core_type<tc>, window_params = [{transform_indices = @transform_0, window_bounds = array<i64: 8, 32>}, {transform_indices = @transform_1, window_bounds = array<i64: 32, 128>}, {transform_indices = @transform_2, window_bounds = array<i64: 8, 128>}]} {
    %c0 = arith.constant 0 : index
    %c0_0 = arith.constant 0 : index
    %0 = vector.load %arg2[%c0, %c0_0] : memref<8x32xbf16, #tpu.memory_space<vmem>>, vector<8x32xbf16>
    %c0_1 = arith.constant 0 : index
    %c0_2 = arith.constant 0 : index
    %1 = vector.load %arg3[%c0_1, %c0_2] : memref<32x128xbf16, #tpu.memory_space<vmem>>, vector<32x128xbf16>
    %cst = arith.constant dense<0.000000e+00> : vector<8x128xf32>
    %2 = tpu.matmul %0, %1, %cst {dimension_numbers = #tpu.dot_dimension_numbers<[1], [0], [0], [1], [0, 0, 1, 1], [], []>} : vector<8x32xbf16>, vector<32x128xbf16>, vector<8x128xf32> -> vector<8x128xf32>
    %c0_3 = arith.constant 0 : index
    %c0_4 = arith.constant 0 : index
    %3 = vector.load %arg4[%c0_3, %c0_4] : memref<8x128xf32, #tpu.memory_space<vmem>>, vector<8x128xf32>
    tpu.vector_store %arg4[%c0_3, %c0_4], %2 {strides = array<i32>} : memref<8x128xf32, #tpu.memory_space<vmem>>, vector<8x128xf32>,
    return
  }
  func.func @transform_0(%arg0: i32, %arg1: i32) -> (i32, i32) {
    %c0_i32 = arith.constant 0 : i32
    %c0_i32_0 = arith.constant 0 : i32
    return %arg0, %c0_i32 : i32, i32
  }
  func.func @transform_1(%arg0: i32, %arg1: i32) -> (i32, i32) {
    %c0_i32 = arith.constant 0 : i32
    %c0_i32_0 = arith.constant 0 : i32
    return %c0_i32, %arg1 : i32, i32
  }
  func.func @transform_2(%arg0: i32, %arg1: i32) -> (i32, i32) {
    %c0_i32 = arith.constant 0 : i32
    return %arg0, %arg1 : i32, i32
  }
}

</mosaic_0001>

<llo_original>
// kernel: connection_forward.1
$region0: #{connection_forward.1}
  #allocation0 [shape = 'u32[]', space=smem, size = 0x4, offset = 0x4, fixed_abs, tag = 'smem constant byte address 0x4 - core index']
  #allocation1 [shape = 'u32[72,128]{1,0:T(1,128)}', space=vmem, size = 0x9000, scoped, tag = 'internal scratch']
  %s0 = inlined_call_operand.vmem [shape: bf16[8,32], index: 0, kind: input, shape index: {}]
  %s1 = inlined_call_operand.vmem [shape: bf16[32,128], index: 1, kind: input, shape index: {}]
  %s2 = inlined_call_operand.hbm [shape: f32[8,128], index: 2, kind: output, shape index: {}]
  %s3 = sld [smem:[#allocation0]]
  $region18: #{connection_forward.1} parent=0
    _
  %s5 = ssub.s32 1, %s3
  %s6 = scalar_select 0, %s5, %s3
  $region1: #{connection_forward.1} parent=0
    #allocation2 [shape = 'u8[4096]{0}', space=vmem, size = 0x1000, scoped, tag = 'output window, operand 0, single buffered']
    #allocation3 [shape = 's32[1]{0}', space=sflag, size = 0x4, scoped, tag = 'scoped memory for connection_forward.1']
    %7 = vsyncpa [#allocation3], 0
    // Predicated region
    $region2: #{connection_forward.1} parent=1 // pred_check
      _
    $region3: #{connection_forward.1} parent=1 // pred_check_branch
      %9 = sbr.rel (0) target = $region5
    $region4: #{connection_forward.1} parent=1 // pred_region
      _
    $region5: #{connection_forward.1} parent=1 // pred_fallthru
      _
    // Predicated region
    $region6: #{connection_forward.1} parent=1 // pred_check
      _
    $region7: #{connection_forward.1} parent=1 // pred_check_branch
      %11 = sbr.rel (0) target = $region9
    $region8: #{connection_forward.1} parent=1 // pred_region
      _
    $region9: #{connection_forward.1} parent=1 // pred_fallthru
      _
    %v13 = vld [vmem:[%s0] sm:$0xf]
    %v14 = vld [vmem:[%s1] sm:$0xf]
    %v15 = vld [vmem:[%s1 + $0x4] sm:$0xf]
    %v16 = vld [vmem:[%s1 + $0x8] sm:$0xf]
    %v17 = vld [vmem:[%s1 + $0xc] sm:$0xf]
    %v22 = vunpack.c.l.b16 %v14
    %v23 = vunpack.c.l.b16 %v15
    %v24 = vunpack.c.l.b16 %v16
    %v25 = vunpack.c.l.b16 %v17
    %v26 = vpack.c.b16 %v23, %v22
    %v27 = vpack.c.b16 %v25, %v24
    %vm30 = vcmask 261120
    %v32 = vsel %vm30, %v13, 0
    %34 = vmatpush.bf16.msra.mxu0 0
    %35 = vmatpush.bf16.msra.mxu0 0
    %36 = vmatpush.bf16.msra.mxu0 0
    %37 = vmatpush.bf16.msra.mxu0 0
    %38 = vmatpush.bf16.msra.mxu0 0
    %39 = vmatpush.bf16.msra.mxu0 0
    %40 = vmatpush.bf16.msra.mxu0 %v27
    %41 = vmatpush.bf16.msra.mxu0 %v26
    %42 = vmatmul.bf16.gmra.mxu0 %v32
    %v43 = vpop.f32.mrf.mxu0
    %v44 = vadd.f32 0.0, %v43
    %v45 = vpop.f32.mrf.mxu0
    %46 = vdwg.mxu0
    %47 = vst [vmem:[#allocation2] sm:$0xff] %v44
    // Predicated region
    $region10: #{connection_forward.1} parent=1 // pred_check
      _
    $region11: #{connection_forward.1} parent=1 // pred_check_branch
      %49 = sbr.rel (0) target = $region13
    $region12: #{connection_forward.1} parent=1 // pred_region
      %51 = vsyncadd [#allocation3], 0
      %s53 = sshll.u32 [#allocation2], 4
      %s54 = int_to_ptr.vmem [resolvable:$true] %s53
      %s55 = sshll.u32 %s2, 4
      %s56 = int_to_ptr.hbm [resolvable:$true] %s55
      %58 = dma.vmem_to_hbm [thread:$0]  %s54, 128, %s56, [#allocation3]
    $region13: #{connection_forward.1} parent=1 // pred_fallthru
      _
    // Predicated region
    $region14: #{connection_forward.1} parent=1 // pred_check
      _
    $region15: #{connection_forward.1} parent=1 // pred_check_branch
      %60 = sbr.rel (0) target = $region17
    $region16: #{connection_forward.1} parent=1 // pred_region
      %62 = dma.done [#allocation3], 128
    $region17: #{connection_forward.1} parent=1 // pred_fallthru
      _
    %63 = vsyncpa [#allocation3], 1

</llo_original>
